<compile_context>
chip_gen: v6e
topology: v6e:2x2x1
jax: 0.10.0
libtpu: 0.0.40
codegen_flags: <defaults>
</compile_context>

<pallas_src>
import jax
import jax.numpy as jnp
from jax import lax
from jax.experimental import pallas as pl
from jax.experimental.pallas import tpu as pltpu

NEG_SLOPE = 0.01     # torch.nn.LeakyReLU default
NEG_INIT = -1e30     # plain Python float -> inlined as a literal (no captured const)


def _leaky_relu(v):
    return jnp.where(v > 0, v, NEG_SLOPE * v)


def _round_up(n, m):
    return (n + m - 1) // m * m


def global_node_kernel(x_ref, bi_ref, xgp_ref,
                       wfg_ref, bfg_ref,
                       wt1_ref, wt2_ref, bt_ref,
                       out_ref,
                       m_ref, acc_ref):
    TN = x_ref.shape[0]
    B, D = out_ref.shape
    step = pl.program_id(0)

    @pl.when(step == 0)
    def _init():
        m_ref[...] = jnp.full(m_ref.shape, NEG_INIT, jnp.float32)
        acc_ref[...] = jnp.zeros_like(acc_ref)

    # --- fused gate + feature matmul (f32 on the idle MXU), lane-dense output ---
    z = jnp.dot(x_ref[...], wfg_ref[...],
                preferred_element_type=jnp.float32) + bfg_ref[...]      # [TN, DP]
    gate = z[:, D:D + 1]                                                # [TN, 1] pre-activation

    # --- membership / validity masks (padded & OOB rows have graph id >= B) ---
    bi = bi_ref[...]                                                    # [TN, 1]
    valid = bi < B                                                      # [TN, 1]
    memb = bi == lax.broadcasted_iota(jnp.int32, (TN, B), 1)            # [TN, B]

    # feat with an extra "ones" column (folds the softmax denominator into the
    # matmul); invalid rows zeroed so OOB garbage (NaN/Inf) can't poison the MXU.
    col = lax.broadcasted_iota(jnp.int32, (TN, D + 1), 1)
    feat1 = jnp.where(valid,
                      jnp.where(col < D, _leaky_relu(z[:, :D + 1]), 1.0),
                      0.0)                                              # [TN, D+1]

    # --- online (flash-style) per-graph softmax statistics ---
    g_masked = jnp.where(memb, gate, NEG_INIT)                          # [TN, B]
    m_old = m_ref[...]                                                  # [1, B]
    m_new = jnp.maximum(m_old, jnp.max(g_masked, axis=0, keepdims=True))
    scale = jnp.exp(m_old - m_new)                                      # [1, B], <= 1
    # keep the memb mask: graphs with no nodes stay exactly zero (-> NaN like ref)
    e_nb = jnp.where(memb, jnp.exp(g_masked - m_new), 0.0)              # [TN, B]

    # segment-sum on the MXU: contrib[d, b] = sum_n feat1[n, d] * e_nb[n, b];
    # row D of contrib is the denominator increment.
    contrib = lax.dot_general(feat1, e_nb, (((0,), (0,)), ((), ())),
                              preferred_element_type=jnp.float32)       # [D+1, B]

    m_ref[...] = m_new
    acc_ref[...] = acc_ref[...] * scale + contrib                       # sublane-bcast rescale

    # --- finalize: normalize + transform(cat([xg, xg_prev])) + xg_prev ---
    @pl.when(step == pl.num_programs(0) - 1)
    def _finalize():
        acc = acc_ref[...]                                              # [D+1, B]
        xg_db = acc[:D, :] / acc[D:D + 1, :]                            # [D, B]; 0/0 = NaN for empty graphs
        xgp = xgp_ref[...]                                              # [B, D]
        t = (lax.dot_general(xg_db, wt1_ref[...], (((0,), (0,)), ((), ())),
                             preferred_element_type=jnp.float32)        # one-time transpose, negligible
             + jnp.dot(xgp, wt2_ref[...], preferred_element_type=jnp.float32)
             + bt_ref[...])                                             # [B, D]
        out_ref[...] = _leaky_relu(t) + xgp


def global_node(xg_prev, x, batch_ind, params, *, node_tile=4096):
    """xg_prev: [B, D] f32, x: [N, D] f32, batch_ind: [N] int32."""
    B, D = xg_prev.shape
    N = x.shape[0]
    DP = _round_up(D + 1, 128)       # lane-dense fused-matmul output width

    # fused [Wf | wm] weight, gate column at fixed slot D, zero-padded to DP lanes
    wfg = (jnp.zeros((D, DP), jnp.float32)
           .at[:, :D].set(params['wf'].astype(jnp.float32))
           .at[:, D].set(params['wm'][:, 0].astype(jnp.float32)))
    bfg = (jnp.zeros((1, DP), jnp.float32)
           .at[:, :D].set(params['bf'].astype(jnp.float32))
           .at[0, D].set(params['bm'][0, 0].astype(jnp.float32)))
    wt1 = params['wt1'].astype(jnp.float32)
    wt2 = params['wt2'].astype(jnp.float32)
    bt = params['bt'].astype(jnp.float32)
    xg_prev = xg_prev.astype(jnp.float32)
    x = x.astype(jnp.float32)

    # Node tiling.  x streams unpadded (the ragged last tile reads unspecified
    # bytes which are masked in-kernel); only batch_ind is padded, with graph
    # id == B so padded rows are excluded from every graph's softmax.
    TN = _round_up(min(node_tile, N), 8)
    num_tiles = (N + TN - 1) // TN
    N_pad = num_tiles * TN
    bi_p = jnp.full((N_pad, 1), B, jnp.int32).at[:N, 0].set(batch_ind.astype(jnp.int32))

    const2 = lambda i: (0, 0)
    grid_spec = pltpu.PrefetchScalarGridSpec(
        num_scalar_prefetch=0,
        grid=(num_tiles,),
        in_specs=[
            pl.BlockSpec((TN, D), lambda i: (i, 0)),   # x          (streamed f32, unpadded)
            pl.BlockSpec((TN, 1), lambda i: (i, 0)),   # batch_ind  (streamed)
            pl.BlockSpec((B, D), const2),              # xg_prev    (resident)
            pl.BlockSpec((D, DP), const2),             # [Wf | wm | 0]
            pl.BlockSpec((1, DP), const2),             # [bf | bm | 0]
            pl.BlockSpec((D, D), const2),              # Wt1
            pl.BlockSpec((D, D), const2),              # Wt2
            pl.BlockSpec((1, D), const2),              # bt
        ],
        out_specs=pl.BlockSpec((B, D), const2),
        scratch_shapes=[
            pltpu.VMEM((1, B), jnp.float32),           # running per-graph max m
            pltpu.VMEM((D + 1, B), jnp.float32),       # running [weighted-feat sum ; denom]
        ],
    )
    return pl.pallas_call(
        global_node_kernel,
        out_shape=jax.ShapeDtypeStruct((B, D), jnp.float32),
        grid_spec=grid_spec,
        compiler_params=pltpu.CompilerParams(
            dimension_semantics=("arbitrary",),        # node axis is a reduction
            vmem_limit_bytes=32 * 1024 * 1024,         # fits v7x; raise + enlarge tiles on v5e/v6e
        ),
    )(x, bi_p, xg_prev, wfg, bfg, wt1, wt2, bt)


def global_node_ref(xg_prev, x, batch_ind, params):
    """Pure-JAX f32 reference matching PyG GlobalAttention + transform."""
    B, D = xg_prev.shape
    gate = x @ params['wm'] + params['bm'][0, 0]
    feat = jax.nn.leaky_relu(x @ params['wf'] + params['bf'], NEG_SLOPE)
    memb = batch_ind[:, None] == jnp.arange(B)[None, :]
    g_nb = jnp.where(memb, gate, -jnp.inf)
    m_b = jnp.max(g_nb, axis=0, keepdims=True)
    e_nb = jnp.where(memb, jnp.exp(g_nb - m_b), 0.0)
    alpha = e_nb / jnp.sum(e_nb, axis=0, keepdims=True)
    xg = alpha.T @ feat
    t = xg @ params['wt1'] + xg_prev @ params['wt2'] + params['bt']
    return jax.nn.leaky_relu(t, NEG_SLOPE) + xg_prev


def init_params(key, emb_dim):
    """Deterministic torch.nn.Linear-style init (uniform +-1/sqrt(fan_in))."""
    ks = jax.random.split(key, 6)
    def lin(kw, kb, fan_in, shape_w, shape_b):
        bound = 1.0 / (fan_in ** 0.5)
        w = jax.random.uniform(kw, shape_w, jnp.float32, -bound, bound)
        b = jax.random.uniform(kb, shape_b, jnp.float32, -bound, bound)
        return w, b
    wm, bm = lin(ks[0], ks[1], emb_dim, (emb_dim, 1), (1, 1))
    wf, bf = lin(ks[2], ks[3], emb_dim, (emb_dim, emb_dim), (1, emb_dim))
    # transform Linear(2D -> D): split weight into xg part and xg_prev part
    wt, bt = lin(ks[4], ks[5], 2 * emb_dim, (2 * emb_dim, emb_dim), (1, emb_dim))
    return {'wm': wm, 'bm': bm, 'wf': wf, 'bf': bf,
            'wt1': wt[:emb_dim], 'wt2': wt[emb_dim:], 'bt': bt}


if __name__ == "__main__":
    emb_dim = 32      # config.emb_dim
    key = jax.random.PRNGKey(0)
    k_x, k_xp, k_p, k_x2, k_xp2 = jax.random.split(key, 5)
    params = init_params(k_p, emb_dim)

    # --- small run: exercises multi-tile online softmax + ragged (OOB) last tile ---
    n_nodes, n_graphs = 44, 3
    x = jax.random.normal(k_x, (n_nodes, emb_dim), jnp.float32)
    xg_prev = jax.random.normal(k_xp, (n_graphs, emb_dim), jnp.float32)
    batch_ind = jnp.concatenate([
        jnp.full((14,), 0, jnp.int32),
        jnp.full((18,), 1, jnp.int32),
        jnp.full((12,), 2, jnp.int32),
    ])
    out = jax.block_until_ready(global_node(xg_prev, x, batch_ind, params, node_tile=16))
    ref = global_node_ref(xg_prev, x, batch_ind, params)
    assert out.shape == (n_graphs, emb_dim)
    err = float(jnp.max(jnp.abs(out - ref)))
    assert jnp.allclose(out, ref, atol=1e-2, rtol=1e-2), \
        f"small-run mismatch vs pure-JAX reference (max abs err {err})"

    # --- larger run: default large-tile streaming path with a ragged tail ---
    n_nodes2, n_graphs2 = 6000, 5
    x2 = jax.random.normal(k_x2, (n_nodes2, emb_dim), jnp.float32)
    xg_prev2 = jax.random.normal(k_xp2, (n_graphs2, emb_dim), jnp.float32)
    batch_ind2 = jnp.repeat(jnp.arange(n_graphs2, dtype=jnp.int32),
                            n_nodes2 // n_graphs2)
    out2 = jax.block_until_ready(global_node(xg_prev2, x2, batch_ind2, params))
    ref2 = global_node_ref(xg_prev2, x2, batch_ind2, params)
    err2 = float(jnp.max(jnp.abs(out2 - ref2)))
    assert jnp.allclose(out2, ref2, atol=1e-2, rtol=1e-2), \
        f"large-run mismatch vs pure-JAX reference (max abs err {err2})"

    print("KERNEL_OK")
</pallas_src>

<mosaic_0001>
module attributes {stable_mosaic.version = 11 : i64} {
  func.func @global_node_kernel(%arg0: i32, %arg1: memref<16x32xf32, #tpu.memory_space<vmem>>, %arg2: memref<16x1xi32, #tpu.memory_space<vmem>>, %arg3: memref<3x32xf32, #tpu.memory_space<vmem>>, %arg4: memref<32x128xf32, #tpu.memory_space<vmem>>, %arg5: memref<1x128xf32, #tpu.memory_space<vmem>>, %arg6: memref<32x32xf32, #tpu.memory_space<vmem>>, %arg7: memref<32x32xf32, #tpu.memory_space<vmem>>, %arg8: memref<1x32xf32, #tpu.memory_space<vmem>>, %arg9: memref<3x32xf32, #tpu.memory_space<vmem>>, %arg10: memref<1x3xf32, #tpu.memory_space<vmem>>, %arg11: memref<33x3xf32, #tpu.memory_space<vmem>>) attributes {dimension_semantics = [#tpu.dimension_semantics<arbitrary>], iteration_bounds = array<i64: 3>, scalar_prefetch = 0 : i64, scratch_operands = 2 : i64, tpu.core_type = #tpu.core_type<tc>, window_params = [{transform_indices = @transform_0, window_bounds = array<i64: 16, 32>}, {transform_indices = @transform_1, window_bounds = array<i64: 16, 1>}, {pipeline_mode = #tpu.pipeline_mode<synchronous>, transform_indices = @transform_2, window_bounds = array<i64: 3, 32>}, {pipeline_mode = #tpu.pipeline_mode<synchronous>, transform_indices = @transform_3, window_bounds = array<i64: 32, 128>}, {pipeline_mode = #tpu.pipeline_mode<synchronous>, transform_indices = @transform_4, window_bounds = array<i64: 1, 128>}, {pipeline_mode = #tpu.pipeline_mode<synchronous>, transform_indices = @transform_5, window_bounds = array<i64: 32, 32>}, {pipeline_mode = #tpu.pipeline_mode<synchronous>, transform_indices = @transform_6, window_bounds = array<i64: 32, 32>}, {pipeline_mode = #tpu.pipeline_mode<synchronous>, transform_indices = @transform_7, window_bounds = array<i64: 1, 32>}, {pipeline_mode = #tpu.pipeline_mode<synchronous>, transform_indices = @transform_8, window_bounds = array<i64: 3, 32>}]} {
    %c0_i32 = arith.constant 0 : i32
    %0 = arith.cmpi eq, %arg0, %c0_i32 : i32
    %1 = arith.extui %0 : i1 to i32
    %c0_i32_0 = arith.constant 0 : i32
    %2 = arith.cmpi ne, %1, %c0_i32_0 : i32
    scf.if %2 {
      %cst_25 = arith.constant -1.000000e+30 : f32
      %56 = vector.broadcast %cst_25 : f32 to vector<1x3xf32>
      %c0_26 = arith.constant 0 : index
      %c0_27 = arith.constant 0 : index
      %57 = vector.load %arg10[%c0_26, %c0_27] : memref<1x3xf32, #tpu.memory_space<vmem>>, vector<1x3xf32>
      tpu.vector_store %arg10[%c0_26, %c0_27], %56 {strides = array<i32>} : memref<1x3xf32, #tpu.memory_space<vmem>>, vector<1x3xf32>,
      %cst_28 = arith.constant 0.000000e+00 : f32
      %58 = vector.broadcast %cst_28 : f32 to vector<33x3xf32>
      %c0_29 = arith.constant 0 : index
      %c0_30 = arith.constant 0 : index
      %59 = vector.load %arg11[%c0_29, %c0_30] : memref<33x3xf32, #tpu.memory_space<vmem>>, vector<33x3xf32>
      tpu.vector_store %arg11[%c0_29, %c0_30], %58 {strides = array<i32>} : memref<33x3xf32, #tpu.memory_space<vmem>>, vector<33x3xf32>,
    } else {
    }
    %c0 = arith.constant 0 : index
    %c0_1 = arith.constant 0 : index
    %3 = vector.load %arg1[%c0, %c0_1] : memref<16x32xf32, #tpu.memory_space<vmem>>, vector<16x32xf32>
    %c0_2 = arith.constant 0 : index
    %c0_3 = arith.constant 0 : index
    %4 = vector.load %arg4[%c0_2, %c0_3] : memref<32x128xf32, #tpu.memory_space<vmem>>, vector<32x128xf32>
    %cst = arith.constant dense<0.000000e+00> : vector<16x128xf32>
    %5 = tpu.matmul %3, %4, %cst {dimension_numbers = #tpu.dot_dimension_numbers<[1], [0], [0], [1], [0, 0, 1, 1], [], []>} : vector<16x32xf32>, vector<32x128xf32>, vector<16x128xf32> -> vector<16x128xf32>
    %c0_4 = arith.constant 0 : index
    %c0_5 = arith.constant 0 : index
    %6 = vector.load %arg5[%c0_4, %c0_5] : memref<1x128xf32, #tpu.memory_space<vmem>>, vector<1x128xf32>
    %7 = vector.broadcast %6 : vector<1x128xf32> to vector<16x128xf32>
    %8 = arith.addf %5, %7 : vector<16x128xf32>
    %9 = vector.extract_strided_slice %8 {offsets = [0, 32], sizes = [16, 1], strides = [1, 1]} : vector<16x128xf32> to vector<16x1xf32>
    %c0_6 = arith.constant 0 : index
    %c0_7 = arith.constant 0 : index
    %10 = vector.load %arg2[%c0_6, %c0_7] : memref<16x1xi32, #tpu.memory_space<vmem>>, vector<16x1xi32>
    %c3_i32 = arith.constant 3 : i32
    %11 = vector.broadcast %c3_i32 : i32 to vector<16x1xi32>
    %12 = arith.cmpi slt, %10, %11 : vector<16x1xi32>
    %13 = tpu.iota {dimensions = array<i32: 1>} : vector<16x3xi32>
    %14 = vector.broadcast %10 : vector<16x1xi32> to vector<16x3xi32>
    %15 = arith.cmpi eq, %14, %13 : vector<16x3xi32>
    %16 = tpu.iota {dimensions = array<i32: 1>} : vector<16x33xi32>
    %c32_i32 = arith.constant 32 : i32
    %17 = vector.broadcast %c32_i32 : i32 to vector<16x33xi32>
    %18 = arith.cmpi slt, %16, %17 : vector<16x33xi32>
    %19 = vector.extract_strided_slice %8 {offsets = [0, 0], sizes = [16, 33], strides = [1, 1]} : vector<16x128xf32> to vector<16x33xf32>
    %cst_8 = arith.constant 0.000000e+00 : f32
    %20 = vector.broadcast %cst_8 : f32 to vector<16x33xf32>
    %21 = arith.cmpf ogt, %19, %20 : vector<16x33xf32>
    %cst_9 = arith.constant 0.00999999977 : f32
    %22 = vector.broadcast %cst_9 : f32 to vector<16x33xf32>
    %23 = arith.mulf %22, %19 : vector<16x33xf32>
    %24 = arith.select %21, %19, %23 : vector<16x33xi1>, vector<16x33xf32>
    %cst_10 = arith.constant 1.000000e+00 : f32
    %25 = vector.broadcast %cst_10 : f32 to vector<16x33xf32>
    %26 = arith.select %18, %24, %25 : vector<16x33xi1>, vector<16x33xf32>
    %cst_11 = arith.constant 0.000000e+00 : f32
    %27 = vector.shape_cast %12 : vector<16x1xi1> to vector<16x1xi1>
    %28 = vector.broadcast %27 : vector<16x1xi1> to vector<16x33xi1>
    %29 = vector.broadcast %cst_11 : f32 to vector<16x33xf32>
    %30 = arith.select %28, %26, %29 : vector<16x33xi1>, vector<16x33xf32>
    %cst_12 = arith.constant -1.000000e+30 : f32
    %31 = vector.shape_cast %9 : vector<16x1xf32> to vector<16x1xf32>
    %32 = vector.broadcast %31 : vector<16x1xf32> to vector<16x3xf32>
    %33 = vector.broadcast %cst_12 : f32 to vector<16x3xf32>
    %34 = arith.select %15, %32, %33 : vector<16x3xi1>, vector<16x3xf32>
    %c0_13 = arith.constant 0 : index
    %c0_14 = arith.constant 0 : index
    %35 = vector.load %arg10[%c0_13, %c0_14] : memref<1x3xf32, #tpu.memory_space<vmem>>, vector<1x3xf32>
    %cst_15 = arith.constant dense<0xFF800000> : vector<3xf32>
    %36 = vector.multi_reduction <maximumf>, %34, %cst_15 [0] : vector<16x3xf32> to vector<3xf32>
    %37 = vector.shape_cast %36 : vector<3xf32> to vector<1x3xf32>
    %38 = arith.maximumf %35, %37 : vector<1x3xf32>
    %39 = arith.subf %35, %38 : vector<1x3xf32>
    %40 = math.exp %39 : vector<1x3xf32>
    %41 = vector.broadcast %38 : vector<1x3xf32> to vector<16x3xf32>
    %42 = arith.subf %34, %41 : vector<16x3xf32>
    %43 = math.exp %42 : vector<16x3xf32>
    %cst_16 = arith.constant 0.000000e+00 : f32
    %44 = vector.broadcast %cst_16 : f32 to vector<16x3xf32>
    %45 = arith.select %15, %43, %44 : vector<16x3xi1>, vector<16x3xf32>
    %cst_17 = arith.constant dense<0.000000e+00> : vector<33x3xf32>
    %46 = tpu.matmul %30, %45, %cst_17 {dimension_numbers = #tpu.dot_dimension_numbers<[0], [0], [1], [1], [0, 1, 1, 1], [], []>} : vector<16x33xf32>, vector<16x3xf32>, vector<33x3xf32> -> vector<33x3xf32>
    %c0_18 = arith.constant 0 : index
    %c0_19 = arith.constant 0 : index
    %47 = vector.load %arg10[%c0_18, %c0_19] : memref<1x3xf32, #tpu.memory_space<vmem>>, vector<1x3xf32>
    tpu.vector_store %arg10[%c0_18, %c0_19], %38 {strides = array<i32>} : memref<1x3xf32, #tpu.memory_space<vmem>>, vector<1x3xf32>,
    %c0_20 = arith.constant 0 : index
    %c0_21 = arith.constant 0 : index
    %48 = vector.load %arg11[%c0_20, %c0_21] : memref<33x3xf32, #tpu.memory_space<vmem>>, vector<33x3xf32>
    %49 = vector.broadcast %40 : vector<1x3xf32> to vector<33x3xf32>
    %50 = arith.mulf %48, %49 : vector<33x3xf32>
    %51 = arith.addf %50, %46 : vector<33x3xf32>
    %c0_22 = arith.constant 0 : index
    %c0_23 = arith.constant 0 : index
    %52 = vector.load %arg11[%c0_22, %c0_23] : memref<33x3xf32, #tpu.memory_space<vmem>>, vector<33x3xf32>
    tpu.vector_store %arg11[%c0_22, %c0_23], %51 {strides = array<i32>} : memref<33x3xf32, #tpu.memory_space<vmem>>, vector<33x3xf32>,
    %c2_i32 = arith.constant 2 : i32
    %53 = arith.cmpi eq, %arg0, %c2_i32 : i32
    %54 = arith.extui %53 : i1 to i32
    %c0_i32_24 = arith.constant 0 : i32
    %55 = arith.cmpi ne, %54, %c0_i32_24 : i32
    scf.if %55 {
      %c0_25 = arith.constant 0 : index
      %c0_26 = arith.constant 0 : index
      %56 = vector.load %arg11[%c0_25, %c0_26] : memref<33x3xf32, #tpu.memory_space<vmem>>, vector<33x3xf32>
      %57 = vector.extract_strided_slice %56 {offsets = [0, 0], sizes = [32, 3], strides = [1, 1]} : vector<33x3xf32> to vector<32x3xf32>
      %58 = vector.extract_strided_slice %56 {offsets = [32, 0], sizes = [1, 3], strides = [1, 1]} : vector<33x3xf32> to vector<1x3xf32>
      %59 = vector.broadcast %58 : vector<1x3xf32> to vector<32x3xf32>
      %60 = arith.divf %57, %59 : vector<32x3xf32>
      %c0_27 = arith.constant 0 : index
      %c0_28 = arith.constant 0 : index
      %61 = vector.load %arg3[%c0_27, %c0_28] : memref<3x32xf32, #tpu.memory_space<vmem>>, vector<3x32xf32>
      %c0_29 = arith.constant 0 : index
      %c0_30 = arith.constant 0 : index
      %62 = vector.load %arg6[%c0_29, %c0_30] : memref<32x32xf32, #tpu.memory_space<vmem>>, vector<32x32xf32>
      %cst_31 = arith.constant dense<0.000000e+00> : vector<3x32xf32>
      %63 = tpu.matmul %60, %62, %cst_31 {dimension_numbers = #tpu.dot_dimension_numbers<[0], [0], [1], [1], [0, 1, 1, 1], [], []>} : vector<32x3xf32>, vector<32x32xf32>, vector<3x32xf32> -> vector<3x32xf32>
      %c0_32 = arith.constant 0 : index
      %c0_33 = arith.constant 0 : index
      %64 = vector.load %arg7[%c0_32, %c0_33] : memref<32x32xf32, #tpu.memory_space<vmem>>, vector<32x32xf32>
      %cst_34 = arith.constant dense<0.000000e+00> : vector<3x32xf32>
      %65 = tpu.matmul %61, %64, %cst_34 {dimension_numbers = #tpu.dot_dimension_numbers<[1], [0], [0], [1], [0, 0, 1, 1], [], []>} : vector<3x32xf32>, vector<32x32xf32>, vector<3x32xf32> -> vector<3x32xf32>
      %66 = arith.addf %63, %65 : vector<3x32xf32>
      %c0_35 = arith.constant 0 : index
      %c0_36 = arith.constant 0 : index
      %67 = vector.load %arg8[%c0_35, %c0_36] : memref<1x32xf32, #tpu.memory_space<vmem>>, vector<1x32xf32>
      %68 = vector.broadcast %67 : vector<1x32xf32> to vector<3x32xf32>
      %69 = arith.addf %66, %68 : vector<3x32xf32>
      %cst_37 = arith.constant 0.000000e+00 : f32
      %70 = vector.broadcast %cst_37 : f32 to vector<3x32xf32>
      %71 = arith.cmpf ogt, %69, %70 : vector<3x32xf32>
      %cst_38 = arith.constant 0.00999999977 : f32
      %72 = vector.broadcast %cst_38 : f32 to vector<3x32xf32>
      %73 = arith.mulf %72, %69 : vector<3x32xf32>
      %74 = arith.select %71, %69, %73 : vector<3x32xi1>, vector<3x32xf32>
      %75 = arith.addf %74, %61 : vector<3x32xf32>
      %c0_39 = arith.constant 0 : index
      %c0_40 = arith.constant 0 : index
      %76 = vector.load %arg9[%c0_39, %c0_40] : memref<3x32xf32, #tpu.memory_space<vmem>>, vector<3x32xf32>
      tpu.vector_store %arg9[%c0_39, %c0_40], %75 {strides = array<i32>} : memref<3x32xf32, #tpu.memory_space<vmem>>, vector<3x32xf32>,
    } else {
    }
    return
  }
  func.func @transform_0(%arg0: i32) -> (i32, i32) {
    %c0_i32 = arith.constant 0 : i32
    %c0_i32_0 = arith.constant 0 : i32
    return %arg0, %c0_i32 : i32, i32
  }
  func.func @transform_1(%arg0: i32) -> (i32, i32) {
    %c0_i32 = arith.constant 0 : i32
    %c0_i32_0 = arith.constant 0 : i32
    return %arg0, %c0_i32 : i32, i32
  }
  func.func @transform_2(%arg0: i32) -> (i32, i32) {
    %c0_i32 = arith.constant 0 : i32
    %c0_i32_0 = arith.constant 0 : i32
    %c0_i32_1 = arith.constant 0 : i32
    return %c0_i32, %c0_i32_0 : i32, i32
  }
  func.func @transform_3(%arg0: i32) -> (i32, i32) {
    %c0_i32 = arith.constant 0 : i32
    %c0_i32_0 = arith.constant 0 : i32
    %c0_i32_1 = arith.constant 0 : i32
    return %c0_i32, %c0_i32_0 : i32, i32
  }
  func.func @transform_4(%arg0: i32) -> (i32, i32) {
    %c0_i32 = arith.constant 0 : i32
    %c0_i32_0 = arith.constant 0 : i32
    %c0_i32_1 = arith.constant 0 : i32
    return %c0_i32, %c0_i32_0 : i32, i32
  }
  func.func @transform_5(%arg0: i32) -> (i32, i32) {
    %c0_i32 = arith.constant 0 : i32
    %c0_i32_0 = arith.constant 0 : i32
    %c0_i32_1 = arith.constant 0 : i32
    return %c0_i32, %c0_i32_0 : i32, i32
  }
  func.func @transform_6(%arg0: i32) -> (i32, i32) {
    %c0_i32 = arith.constant 0 : i32
    %c0_i32_0 = arith.constant 0 : i32
    %c0_i32_1 = arith.constant 0 : i32
    return %c0_i32, %c0_i32_0 : i32, i32
  }
  func.func @transform_7(%arg0: i32) -> (i32, i32) {
    %c0_i32 = arith.constant 0 : i32
    %c0_i32_0 = arith.constant 0 : i32
    %c0_i32_1 = arith.constant 0 : i32
    return %c0_i32, %c0_i32_0 : i32, i32
  }
  func.func @transform_8(%arg0: i32) -> (i32, i32) {
    %c0_i32 = arith.constant 0 : i32
    %c0_i32_0 = arith.constant 0 : i32
    %c0_i32_1 = arith.constant 0 : i32
    return %c0_i32, %c0_i32_0 : i32, i32
  }
}

</mosaic_0001>

<llo_original>
// kernel: tpu_custom_call.1
$region0: #{tpu_custom_call.1}
  #allocation0 [shape = 'u32[]', space=smem, size = 0x4, offset = 0x4, fixed_abs, tag = 'smem constant byte address 0x4 - core index']
  #allocation1 [shape = 'u32[144,128]{1,0:T(1,128)}', space=vmem, size = 0x12000, scoped, tag = 'internal scratch']
  #allocation2 [shape = 'f32[1,3]{1,0:T(1,128)}', space=vmem, size = 0x200, scoped, tag = 'scratch operand']
  #allocation3 [shape = 'f32[33,3]{1,0:T(8,128)}', space=vmem, size = 0x5000, scoped, tag = 'scratch operand']
  %s0 = inlined_call_operand.vmem [shape: f32[44,32], index: 0, kind: input, shape index: {}]
  %s1 = inlined_call_operand.vmem [shape: s32[48,1], index: 1, kind: input, shape index: {}]
  %s2 = inlined_call_operand.vmem [shape: f32[3,32], index: 2, kind: input, shape index: {}]
  %s3 = inlined_call_operand.vmem [shape: f32[32,128], index: 3, kind: input, shape index: {}]
  %s4 = inlined_call_operand.vmem [shape: f32[1,128], index: 4, kind: input, shape index: {}]
  %s5 = inlined_call_operand.vmem [shape: f32[32,32], index: 5, kind: input, shape index: {}]
  %s6 = inlined_call_operand.vmem [shape: f32[32,32], index: 6, kind: input, shape index: {}]
  %s7 = inlined_call_operand.vmem [shape: f32[1,32], index: 7, kind: input, shape index: {}]
  %s8 = inlined_call_operand.hbm [shape: f32[3,32], index: 8, kind: output, shape index: {}]
  %s9 = sld [smem:[#allocation0]]
  $region73: #{tpu_custom_call.1} parent=0
    _
  %s11 = ssub.s32 1, %s9
  %s12 = scalar_select 0, %s11, %s9
  $region1: #{tpu_custom_call.1} parent=0
    #allocation4 [shape = 'u8[2048]{0}', space=vmem, size = 0x800, scoped, tag = 'output window, operand 0, single buffered']
    #allocation5 [shape = 's32[2]{0}', space=sflag, size = 0x8, scoped, tag = 'scoped memory for tpu_custom_call.1']
    %13 = vsyncpa [#allocation5], 0
    loop: start=0, step=1, limit=5
    $region2: #{tpu_custom_call.1} parent=1 // loop_pre_header
      _
    $region3: #{tpu_custom_call.1} parent=1 // loop_header
      %s15 = sphi 0, %s19
      %p16 = scmp.ge.s32.totalorder %s15, 5
      %s25 = sphi 0, %s27
      %s28 = sphi 0, %s25
      %s29 = sphi 0, %s28
      %s45 = sphi 0, %s29
      %s51 = sphi 0, %s53
      %s54 = sphi 0, %s51
      %s55 = sphi 0, %s54
      %s71 = sphi 0, %s55
      %s75 = sphi 0, %s75
      %s77 = sphi 0, %s75
      %s78 = sphi 0, %s77
      %s92 = sphi 0, %s78
      %s96 = sphi 0, %s96
      %s98 = sphi 0, %s96
      %s99 = sphi 0, %s98
      %s113 = sphi 0, %s99
      %s117 = sphi 0, %s117
      %s119 = sphi 0, %s117
      %s120 = sphi 0, %s119
      %s134 = sphi 0, %s120
      %s138 = sphi 0, %s138
      %s140 = sphi 0, %s138
      %s141 = sphi 0, %s140
      %s155 = sphi 0, %s141
      %s159 = sphi 0, %s159
      %s161 = sphi 0, %s159
      %s162 = sphi 0, %s161
      %s176 = sphi 0, %s162
      %s180 = sphi 0, %s180
      %s182 = sphi 0, %s180
      %s183 = sphi 0, %s182
      %s197 = sphi 0, %s183
      %s201 = sphi 0, %s201
      %s203 = sphi 0, %s201
      %s204 = sphi 0, %s203
      %s218 = sphi 0, %s204
    $region4: #{tpu_custom_call.1} parent=1 // loop_header_branch
      %18 = sbr.rel (%p16) target = $region8
    $region5: #{tpu_custom_call.1} parent=1 // loop_body
      %s20 = ssub.s32 %s15, 1
      %s21 = ssub.s32 %s15, 2
      %s22 = sadd.s32 %s15, 1
      %s23 = ssub.s32 %s15, %s22
      %p24 = scmp.eq.s32.totalorder %s23, 0
      %s26 = sadd.s32 %s25, 1
      %s27 = scalar_select %p24, %s25, %s26
      %p30 = pneg %p24
      %p31 = scmp.eq.s32.totalorder %s15, 2
      %p32 = por %p30, %p31
      %p33 = scmp.ne.s32.totalorder %s25, %s28
      %p34 = scmp.eq.s32.totalorder %s15, 0
      %p35 = por %p33, %p34
      %p36 = scmp.ne.s32.totalorder %s25, %s28
      %p37 = scmp.eq.s32.totalorder %s20, 2
      %p38 = por %p36, %p37
      %p39 = scmp.ne.s32.totalorder %s28, %s29
      %p40 = scmp.eq.s32.totalorder %s20, 0
      %p41 = por %p39, %p40
      %p42 = scmp.ne.s32.totalorder %s28, %s29
      %p43 = scmp.eq.s32.totalorder %s21, 2
      %p44 = por %p42, %p43
      %p46 = scmp.ne.s32.totalorder %s29, %s45
      %p47 = scmp.eq.s32.totalorder %s21, 0
      %p48 = por %p46, %p47
      %s49 = ssub.s32 %s15, %s22
      %p50 = scmp.eq.s32.totalorder %s49, 0
      %s52 = sadd.s32 %s51, 1
      %s53 = scalar_select %p50, %s51, %s52
      %p56 = pneg %p50
      %p57 = scmp.eq.s32.totalorder %s15, 2
      %p58 = por %p56, %p57
      %p59 = scmp.ne.s32.totalorder %s51, %s54
      %p60 = scmp.eq.s32.totalorder %s15, 0
      %p61 = por %p59, %p60
      %p62 = scmp.ne.s32.totalorder %s51, %s54
      %p63 = scmp.eq.s32.totalorder %s20, 2
      %p64 = por %p62, %p63
      %p65 = scmp.ne.s32.totalorder %s54, %s55
      %p66 = scmp.eq.s32.totalorder %s20, 0
      %p67 = por %p65, %p66
      %p68 = scmp.ne.s32.totalorder %s54, %s55
      %p69 = scmp.eq.s32.totalorder %s21, 2
      %p70 = por %p68, %p69
      %p72 = scmp.ne.s32.totalorder %s55, %s71
      %p73 = scmp.eq.s32.totalorder %s21, 0
      %p74 = por %p72, %p73
      %s76 = sadd.s32 %s75, 1
      %p79 = scmp.eq.s32.totalorder %s15, 2
      %p80 = scmp.ne.s32.totalorder %s75, %s77
      %p81 = scmp.eq.s32.totalorder %s15, 0
      %p82 = por %p80, %p81
      %p83 = scmp.ne.s32.totalorder %s75, %s77
      %p84 = scmp.eq.s32.totalorder %s20, 2
      %p85 = por %p83, %p84
      %p86 = scmp.ne.s32.totalorder %s77, %s78
      %p87 = scmp.eq.s32.totalorder %s20, 0
      %p88 = por %p86, %p87
      %p89 = scmp.ne.s32.totalorder %s77, %s78
      %p90 = scmp.eq.s32.totalorder %s21, 2
      %p91 = por %p89, %p90
      %p93 = scmp.ne.s32.totalorder %s78, %s92
      %p94 = scmp.eq.s32.totalorder %s21, 0
      %p95 = por %p93, %p94
      %s97 = sadd.s32 %s96, 1
      %p100 = scmp.eq.s32.totalorder %s15, 2
      %p101 = scmp.ne.s32.totalorder %s96, %s98
      %p102 = scmp.eq.s32.totalorder %s15, 0
      %p103 = por %p101, %p102
      %p104 = scmp.ne.s32.totalorder %s96, %s98
      %p105 = scmp.eq.s32.totalorder %s20, 2
      %p106 = por %p104, %p105
      %p107 = scmp.ne.s32.totalorder %s98, %s99
      %p108 = scmp.eq.s32.totalorder %s20, 0
      %p109 = por %p107, %p108
      %p110 = scmp.ne.s32.totalorder %s98, %s99
      %p111 = scmp.eq.s32.totalorder %s21, 2
      %p112 = por %p110, %p111
      %p114 = scmp.ne.s32.totalorder %s99, %s113
      %p115 = scmp.eq.s32.totalorder %s21, 0
      %p116 = por %p114, %p115
      %s118 = sadd.s32 %s117, 1
      %p121 = scmp.eq.s32.totalorder %s15, 2
      %p122 = scmp.ne.s32.totalorder %s117, %s119
      %p123 = scmp.eq.s32.totalorder %s15, 0
      %p124 = por %p122, %p123
      %p125 = scmp.ne.s32.totalorder %s117, %s119
      %p126 = scmp.eq.s32.totalorder %s20, 2
      %p127 = por %p125, %p126
      %p128 = scmp.ne.s32.totalorder %s119, %s120
      %p129 = scmp.eq.s32.totalorder %s20, 0
      %p130 = por %p128, %p129
      %p131 = scmp.ne.s32.totalorder %s119, %s120
      %p132 = scmp.eq.s32.totalorder %s21, 2
      %p133 = por %p131, %p132
      %p135 = scmp.ne.s32.totalorder %s120, %s134
      %p136 = scmp.eq.s32.totalorder %s21, 0
      %p137 = por %p135, %p136
      %s139 = sadd.s32 %s138, 1
      %p142 = scmp.eq.s32.totalorder %s15, 2
      %p143 = scmp.ne.s32.totalorder %s138, %s140
      %p144 = scmp.eq.s32.totalorder %s15, 0
      %p145 = por %p143, %p144
      %p146 = scmp.ne.s32.totalorder %s138, %s140
      %p147 = scmp.eq.s32.totalorder %s20, 2
      %p148 = por %p146, %p147
      %p149 = scmp.ne.s32.totalorder %s140, %s141
      %p150 = scmp.eq.s32.totalorder %s20, 0
      %p151 = por %p149, %p150
      %p152 = scmp.ne.s32.totalorder %s140, %s141
      %p153 = scmp.eq.s32.totalorder %s21, 2
      %p154 = por %p152, %p153
      %p156 = scmp.ne.s32.totalorder %s141, %s155
      %p157 = scmp.eq.s32.totalorder %s21, 0
      %p158 = por %p156, %p157
      %s160 = sadd.s32 %s159, 1
      %p163 = scmp.eq.s32.totalorder %s15, 2
      %p164 = scmp.ne.s32.totalorder %s159, %s161
      %p165 = scmp.eq.s32.totalorder %s15, 0
      %p166 = por %p164, %p165
      %p167 = scmp.ne.s32.totalorder %s159, %s161
      %p168 = scmp.eq.s32.totalorder %s20, 2
      %p169 = por %p167, %p168
      %p170 = scmp.ne.s32.totalorder %s161, %s162
      %p171 = scmp.eq.s32.totalorder %s20, 0
      %p172 = por %p170, %p171
      %p173 = scmp.ne.s32.totalorder %s161, %s162
      %p174 = scmp.eq.s32.totalorder %s21, 2
      %p175 = por %p173, %p174
      %p177 = scmp.ne.s32.totalorder %s162, %s176
      %p178 = scmp.eq.s32.totalorder %s21, 0
      %p179 = por %p177, %p178
      %s181 = sadd.s32 %s180, 1
      %p184 = scmp.eq.s32.totalorder %s15, 2
      %p185 = scmp.ne.s32.totalorder %s180, %s182
      %p186 = scmp.eq.s32.totalorder %s15, 0
      %p187 = por %p185, %p186
      %p188 = scmp.ne.s32.totalorder %s180, %s182
      %p189 = scmp.eq.s32.totalorder %s20, 2
      %p190 = por %p188, %p189
      %p191 = scmp.ne.s32.totalorder %s182, %s183
      %p192 = scmp.eq.s32.totalorder %s20, 0
      %p193 = por %p191, %p192
      %p194 = scmp.ne.s32.totalorder %s182, %s183
      %p195 = scmp.eq.s32.totalorder %s21, 2
      %p196 = por %p194, %p195
      %p198 = scmp.ne.s32.totalorder %s183, %s197
      %p199 = scmp.eq.s32.totalorder %s21, 0
      %p200 = por %p198, %p199
      %s202 = sadd.s32 %s201, 1
      %p205 = scmp.eq.s32.totalorder %s15, 2
      %p206 = scmp.ne.s32.totalorder %s201, %s203
      %p207 = scmp.eq.s32.totalorder %s15, 0
      %p208 = por %p206, %p207
      %p209 = scmp.ne.s32.totalorder %s201, %s203
      %p210 = scmp.eq.s32.totalorder %s20, 2
      %p211 = por %p209, %p210
      %p212 = scmp.ne.s32.totalorder %s203, %s204
      %p213 = scmp.eq.s32.totalorder %s20, 0
      %p214 = por %p212, %p213
      %p215 = scmp.ne.s32.totalorder %s203, %s204
      %p216 = scmp.eq.s32.totalorder %s21, 2
      %p217 = por %p215, %p216
      %p219 = scmp.ne.s32.totalorder %s204, %s218
      %p220 = scmp.eq.s32.totalorder %s21, 0
      %p221 = por %p219, %p220
      %p222 = scmp.le.s32.totalorder 1, %s15
      %p223 = scmp.lt.s32.totalorder %s15, 4
      %p224 = pnand %p222, %p223
      %p225 = pneg %p224
      // Predicated region
      $region9: #{tpu_custom_call.1} parent=5 // pred_check
        _
      $region10: #{tpu_custom_call.1} parent=5 // pred_check_branch
        %227 = sbr.rel (%p224) target = $region12
      $region11: #{tpu_custom_call.1} parent=5 // pred_region
        %s228 = ssub.s32 %s15, 1
        // Predicated region
        $region13: #{tpu_custom_call.1} parent=11 // pred_check
          %p229 = pneg %p88
        $region14: #{tpu_custom_call.1} parent=11 // pred_check_branch
          %231 = sbr.rel (%p229) target = $region16
        $region15: #{tpu_custom_call.1} parent=11 // pred_region
          _
        $region16: #{tpu_custom_call.1} parent=11 // pred_fallthru
          _
        // Predicated region
        $region17: #{tpu_custom_call.1} parent=11 // pred_check
          %p232 = pneg %p109
        $region18: #{tpu_custom_call.1} parent=11 // pred_check_branch
          %234 = sbr.rel (%p232) target = $region20
        $region19: #{tpu_custom_call.1} parent=11 // pred_region
          _
        $region20: #{tpu_custom_call.1} parent=11 // pred_fallthru
          _
        // Predicated region
        $region21: #{tpu_custom_call.1} parent=11 // pred_check
          %p235 = pneg %p130
        $region22: #{tpu_custom_call.1} parent=11 // pred_check_branch
          %237 = sbr.rel (%p235) target = $region24
        $region23: #{tpu_custom_call.1} parent=11 // pred_region
          _
        $region24: #{tpu_custom_call.1} parent=11 // pred_fallthru
          _
        // Predicated region
        $region25: #{tpu_custom_call.1} parent=11 // pred_check
          %p238 = pneg %p151
        $region26: #{tpu_custom_call.1} parent=11 // pred_check_branch
          %240 = sbr.rel (%p238) target = $region28
        $region27: #{tpu_custom_call.1} parent=11 // pred_region
          _
        $region28: #{tpu_custom_call.1} parent=11 // pred_fallthru
          _
        // Predicated region
        $region29: #{tpu_custom_call.1} parent=11 // pred_check
          %p241 = pneg %p172
        $region30: #{tpu_custom_call.1} parent=11 // pred_check_branch
          %243 = sbr.rel (%p241) target = $region32
        $region31: #{tpu_custom_call.1} parent=11 // pred_region
          _
        $region32: #{tpu_custom_call.1} parent=11 // pred_fallthru
          _
        // Predicated region
        $region33: #{tpu_custom_call.1} parent=11 // pred_check
          %p244 = pneg %p193
        $region34: #{tpu_custom_call.1} parent=11 // pred_check_branch
          %246 = sbr.rel (%p244) target = $region36
        $region35: #{tpu_custom_call.1} parent=11 // pred_region
          _
        $region36: #{tpu_custom_call.1} parent=11 // pred_fallthru
          _
      $region12: #{tpu_custom_call.1} parent=5 // pred_fallthru
        _
      %p247 = scmp.lt.s32.totalorder %s15, 3
      // Predicated region
      $region37: #{tpu_custom_call.1} parent=5 // pred_check
        %p248 = pneg %p247
      $region38: #{tpu_custom_call.1} parent=5 // pred_check_branch
        %250 = sbr.rel (%p248) target = $region40
      $region39: #{tpu_custom_call.1} parent=5 // pred_region
        // Predicated region
        $region41: #{tpu_custom_call.1} parent=39 // pred_check
          %p251 = pneg %p35
        $region42: #{tpu_custom_call.1} parent=39 // pred_check_branch
          %253 = sbr.rel (%p251) target = $region44
        $region43: #{tpu_custom_call.1} parent=39 // pred_region
          %s254 = smul.u32 2, %s15
          %p255 = scmp.lt.s32.totalorder %s254, 5
          %s256 = scalar_select %p255, %s254, 5
          %s257 = smul.addr %s256, 8
          %s258 = scalar_lea.vmem %s0, %s257
          %s259 = smul.u32 2, %s15
        $region44: #{tpu_custom_call.1} parent=39 // pred_fallthru
          _
        // Predicated region
        $region45: #{tpu_custom_call.1} parent=39 // pred_check
          %p260 = pneg %p61
        $region46: #{tpu_custom_call.1} parent=39 // pred_check_branch
          %262 = sbr.rel (%p260) target = $region48
        $region47: #{tpu_custom_call.1} parent=39 // pred_region
          %s263 = smul.u32 2, %s15
          %p264 = scmp.lt.s32.totalorder %s263, 5
          %s265 = scalar_select %p264, %s263, 5
          %s266 = smul.addr %s265, 8
          %s267 = scalar_lea.vmem %s1, %s266
          %s268 = smul.u32 2, %s15
        $region48: #{tpu_custom_call.1} parent=39 // pred_fallthru
          _
      $region40: #{tpu_custom_call.1} parent=5 // pred_fallthru
        _
      %p269 = scmp.le.s32.totalorder 1, %s15
      %p270 = scmp.lt.s32.totalorder %s15, 4
      %p271 = pnand %p269, %p270
      %p272 = pneg %p271
      // Predicated region
      $region49: #{tpu_custom_call.1} parent=5 // pred_check
        _
      $region50: #{tpu_custom_call.1} parent=5 // pred_check_branch
        %274 = sbr.rel (%p271) target = $region52
      $region51: #{tpu_custom_call.1} parent=5 // pred_region
        %s275 = ssub.s32 %s15, 1
        %s276 = smul.u32 2, %s20
        %p277 = scmp.lt.s32.totalorder %s276, 5
        %s278 = scalar_select %p277, %s276, 5
        %s279 = smul.addr %s278, 8
        %s280 = scalar_lea.vmem %s0, %s279
        %p281 = pneg %p41
        %p282 = pneg %p38
        %s283 = smul.u32 2, %s20
        %p284 = scmp.lt.s32.totalorder %s283, 5
        %s285 = scalar_select %p284, %s283, 5
        %s286 = smul.addr %s285, 8
        %s287 = scalar_lea.vmem %s1, %s286
        %p288 = pneg %p67
        %p289 = pneg %p64
        %p290 = pneg %p88
        %p291 = pneg %p85
        %p292 = pneg %p109
        %p293 = pneg %p106
        %p294 = pneg %p130
        %p295 = pneg %p127
        %p296 = pneg %p151
        %p297 = pneg %p148
        %p298 = pneg %p172
        %p299 = pneg %p169
        %p300 = pneg %p193
        %p301 = pneg %p190
        %p302 = pneg %p214
        %p303 = pneg %p211
        %s304 = smul.u32 2, %s20
        %p305 = scmp.lt.s32.totalorder %s304, 5
        %s306 = scalar_select %p305, %s304, 5
        %s307 = smul.addr %s306, 8
        %s308 = scalar_lea.vmem %s0, %s307
        %s309 = smul.u32 2, %s20
        %s310 = smul.u32 2, %s20
        %p311 = scmp.lt.s32.totalorder %s310, 5
        %s312 = scalar_select %p311, %s310, 5
        %s313 = smul.addr %s312, 8
        %s314 = scalar_lea.vmem %s1, %s313
        %s315 = smul.u32 2, %s20
        %p316 = scmp.eq.s32.totalorder %s20, 0
        // Predicated region
        $region53: #{tpu_custom_call.1} parent=51 // pred_check
          %p317 = pneg %p316
        $region54: #{tpu_custom_call.1} parent=51 // pred_check_branch
          %319 = sbr.rel (%p317) target = $region56
        $region55: #{tpu_custom_call.1} parent=51 // pred_region
          %vm320 = vcmask 16384
          %321 = vst.msk [vmem:[#allocation2] sm:$0x1] %vm320, -1e+30
          %vm322 = vcmask 23552
          %323 = vst.msk [vmem:[#allocation3] sm:$0xff] %vm322, 0.0
          %324 = vst.msk [vmem:[#allocation3 + $0x8] sm:$0xff] %vm322, 0.0
          %325 = vst.msk [vmem:[#allocation3 + $0x10] sm:$0xff] %vm322, 0.0
          %326 = vst.msk [vmem:[#allocation3 + $0x18] sm:$0xff] %vm322, 0.0
          %327 = vst.msk [vmem:[#allocation3 + $0x20] sm:$0x1] %vm320, 0.0
        $region56: #{tpu_custom_call.1} parent=51 // pred_fallthru
          _
        %v328 = vld [vmem:[%s308] sm:$0xff]
        %v329 = vld [vmem:[%s308 + $0x8] sm:$0xff]
        %v330 = vld [vmem:[%s3] sm:$0xff]
        %v331 = vld [vmem:[%s3 + $0x8] sm:$0xff]
        %v332 = vld [vmem:[%s3 + $0x10] sm:$0xff]
        %v333 = vld [vmem:[%s3 + $0x18] sm:$0xff]
        %v334 = vld [vmem:[%s4] sm:$0x1]
        %v336 = vlaneseq
        %v337 = vshrl.u32 %v336, 7
        %v338 = vsub.s32 0, %v337
        %v339 = vrot.slane %v334, %v338
        %vm341 = vcmask 261120
        %v343 = vsel %vm341, %v328, 0
        %v346 = vsel %vm341, %v329, 0
        %348 = vmatprep.subr.mxu0 0.0
        %349 = vmatpush1.msra.mxu0 0.0
        %350 = vmatprep.subr.mxu0 0.0
        %351 = vmatpush1.msra.mxu0 0.0
        %352 = vmatprep.subr.mxu0 0.0
        %353 = vmatpush1.msra.mxu0 0.0
        %354 = vmatprep.subr.mxu0 0.0
        %355 = vmatpush1.msra.mxu0 0.0
        %356 = vmatprep.subr.mxu0 0.0
        %357 = vmatpush1.msra.mxu0 0.0
        %358 = vmatprep.subr.mxu0 0.0
        %359 = vmatpush1.msra.mxu0 0.0
        %360 = vmatprep.subr.mxu0 0.0
        %361 = vmatpush1.msra.mxu0 0.0
        %362 = vmatprep.subr.mxu0 0.0
        %363 = vmatpush1.msra.mxu0 0.0
        %364 = vmatprep.subr.mxu0 0.0
        %365 = vmatpush1.msra.mxu0 0.0
        %366 = vmatprep.subr.mxu0 0.0
        %367 = vmatpush1.msra.mxu0 0.0
        %368 = vmatprep.subr.mxu0 0.0
        %369 = vmatpush1.msra.mxu0 0.0
        %370 = vmatprep.subr.mxu0 0.0
        %371 = vmatpush1.msra.mxu0 0.0
        %372 = vmatprep.subr.mxu0 0.0
        %373 = vmatpush1.msra.mxu0 %v333
        %374 = vmatprep.subr.mxu0 0.0
        %375 = vmatpush1.msra.mxu0 %v332
        %376 = vmatprep.subr.mxu0 0.0
        %377 = vmatpush1.msra.mxu0 %v331
        %378 = vmatprep.subr.mxu0 0.0
        %379 = vmatpush1.msra.mxu0 %v330
        %380 = vmatprep.subr.mxu0 0.0
        %381 = vmatpush2.msra.mxu0 0.0
        %382 = vmatprep.subr.mxu0 0.0
        %383 = vmatpush2.msra.mxu0 0.0
        %384 = vmatprep.subr.mxu0 0.0
        %385 = vmatpush2.msra.mxu0 0.0
        %386 = vmatprep.subr.mxu0 0.0
        %387 = vmatpush2.msra.mxu0 0.0
        %388 = vmatprep.subr.mxu0 0.0
        %389 = vmatpush2.msra.mxu0 0.0
        %390 = vmatprep.subr.mxu0 0.0
        %391 = vmatpush2.msra.mxu0 0.0
        %392 = vmatprep.subr.mxu0 0.0
        %393 = vmatpush2.msra.mxu0 0.0
        %394 = vmatprep.subr.mxu0 0.0
        %395 = vmatpush2.msra.mxu0 0.0
        %396 = vmatprep.subr.mxu0 0.0
        %397 = vmatpush2.msra.mxu0 0.0
        %398 = vmatprep.subr.mxu0 0.0
        %399 = vmatpush2.msra.mxu0 0.0
        %400 = vmatprep.subr.mxu0 0.0
        %401 = vmatpush2.msra.mxu0 0.0
        %402 = vmatprep.subr.mxu0 0.0
        %403 = vmatpush2.msra.mxu0 0.0
        %404 = vmatprep.subr.mxu0 0.0
        %405 = vmatpush2.msra.mxu0 0.0
        %406 = vmatprep.subr.mxu0 0.0
        %407 = vmatpush2.msra.mxu0 0.0
        %408 = vmatprep.subr.mxu0 0.0
        %409 = vmatpush2.msra.mxu0 0.0
        %410 = vmatprep.subr.mxu0 0.0
        %411 = vmatpush2.msra.mxu0 0.0
        %412 = vmatprep.mubr.f32.mxu0 0.0
        %413 = vmatmul.mubr.f32.gmra.mxu0 %v343
        %v414 = vpop.f32.mrf.mxu0
        %v415 = vadd.f32 %v339, %v414
        %v416 = vpop.f32.mrf.mxu0
        %417 = vmatprep.mubr.f32.mxu0 0.0
        %418 = vmatmul.mubr.f32.gmra.mxu0 %v346
        %v419 = vpop.f32.mrf.mxu0
        %v420 = vadd.f32 %v339, %v419
        %v421 = vpop.f32.mrf.mxu0
        %422 = vdwg.mxu0
        %v423 = vld [vmem:[%s314] sm:$0xff]
        %v424 = vld [vmem:[%s314 + $0x8] sm:$0xff]
        %vm425 = vcmp.lt.s32.totalorder %v423, 3
        %vm426 = vcmp.lt.s32.totalorder %v424, 3
        %v427 = vlaneseq
        %v428 = vand.u32 %v427, 127
        %429 = vset.pattern.permute.xlu0 0
        %430 = vperm.xlu0 %429, %v423
        %v431 = vpop.permute.xlu0 %430
        %432 = vset.pattern.permute.xlu0 0
        %433 = vperm.xlu0 %432, %v424
        %v434 = vpop.permute.xlu0 %433
        %vm435 = vcmp.eq.s32.totalorder %v431, %v428
        %vm436 = vcmp.eq.s32.totalorder %v434, %v428
        %vm437 = vcmp.lt.s32.totalorder %v428, 32
        %vm438 = vcmp.gt.f32.partialorder %v415, 0.0
        %vm439 = vcmp.gt.f32.partialorder %v420, 0.0
        %v440 = vmul.f32 %v415, 0.01
        %v441 = vmul.f32 %v420, 0.01
        %v442 = vsel %vm438, %v415, %v440
        %v443 = vsel %vm439, %v420, %v441
        %v444 = vsel %vm437, %v442, 1.0
        %v445 = vsel %vm437, %v443, 1.0
        %v446 = vsel %vm425, 1, 0
        %v447 = vsel %vm426, 1, 0
        %448 = vset.pattern.permute.xlu0 0
        %449 = vperm.xlu0 %448, %v446
        %v450 = vpop.permute.xlu0 %449
        %451 = vset.pattern.permute.xlu0 0
        %452 = vperm.xlu0 %451, %v447
        %v453 = vpop.permute.xlu0 %452
        %vm454 = vcmp.eq.s32.totalorder %v450, 1
        %vm455 = vcmp.eq.s32.totalorder %v453, 1
        %v456 = vsel %vm454, %v444, 0.0
        %v457 = vsel %vm455, %v445, 0.0
        %459 = vset.pattern.permute.xlu0 32
        %460 = vperm.xlu0 %459, %v415
        %v461 = vpop.permute.xlu0 %460
        %464 = vset.pattern.permute.xlu0 32
        %465 = vperm.xlu0 %464, %v420
        %v466 = vpop.permute.xlu0 %465
        %v468 = vsel %vm435, %v461, -1e+30
        %v469 = vsel %vm436, %v466, -1e+30
        %v470 = vld [vmem:[#allocation2] sm:$0x1]
        %vm471 = vcmask 23552
        %v472 = vsel %vm471, %v468, -inf
        %v473 = vsel %vm471, %v469, -inf
        %v474 = vmax.f32 %v472, %v473
        %v475 = vrot.slane %v474, 4
        %v476 = vmax.f32 %v474, %v475
        %v477 = vrot.slane %v476, 2
        %v478 = vmax.f32 %v476, %v477
        %v479 = vrot.slane %v478, 1
        %v480 = vmax.f32 %v478, %v479
        %v481 = vmax.f32 %v470, %v480
        %v482 = vsub.f32 %v470, %v481
        %v483 = vmul.f32 %v482, 1.442695
        %v484 = vpow.pop %v483
        %v486 = vlaneseq
        %v487 = vshrl.u32 %v486, 7
        %v488 = vsub.s32 0, %v487
        %v489 = vrot.slane %v481, %v488
        %v491 = vsub.f32 %v468, %v489
        %v492 = vsub.f32 %v469, %v489
        %v493 = vmul.f32 %v491, 1.442695
        %v494 = vpow.pop %v493
        %v495 = vmul.f32 %v492, 1.442695
        %v496 = vpow.pop %v495
        %v497 = vsel %vm435, %v494, 0.0
        %v498 = vsel %vm436, %v496, 0.0
        %499 = vxpose.xlu0.b32.start [1/16] %v456, 128
        %500 = vxpose.xlu0.b32.cont [2/16] %v457, 128
        %501 = vxpose.xlu0.b32.cont [3/16] 0.0, 128
        %502 = vxpose.xlu0.b32.cont [4/16] 0.0, 128
        %503 = vxpose.xlu0.b32.cont [5/16] 0.0, 128
        %504 = vxpose.xlu0.b32.cont [6/16] 0.0, 128
        %505 = vxpose.xlu0.b32.cont [7/16] 0.0, 128
        %506 = vxpose.xlu0.b32.cont [8/16] 0.0, 128
        %507 = vxpose.xlu0.b32.cont [9/16] 0.0, 128
        %508 = vxpose.xlu0.b32.cont [10/16] 0.0, 128
        %509 = vxpose.xlu0.b32.cont [11/16] 0.0, 128
        %510 = vxpose.xlu0.b32.cont [12/16] 0.0, 128
        %511 = vxpose.xlu0.b32.cont [13/16] 0.0, 128
        %512 = vxpose.xlu0.b32.cont [14/16] 0.0, 128
        %513 = vxpose.xlu0.b32.cont [15/16] 0.0, 128
        %514 = vxpose.xlu0.b32.end [16/16] 0.0, 128
        %v515 = vpop.trf.xlu0
        %v516 = vpop.trf.xlu0
        %v517 = vpop.trf.xlu0
        %v518 = vpop.trf.xlu0
        %v519 = vpop.trf.xlu0
        %v520 = vpop.trf.xlu0
        %v521 = vpop.trf.xlu0
        %v522 = vpop.trf.xlu0
        %v523 = vpop.trf.xlu0
        %v524 = vpop.trf.xlu0
        %v525 = vpop.trf.xlu0
        %v526 = vpop.trf.xlu0
        %v527 = vpop.trf.xlu0
        %v528 = vpop.trf.xlu0
        %v529 = vpop.trf.xlu0
        %v530 = vpop.trf.xlu0
        %vm531 = vcmask 130048
        %v533 = vsel %vm531, %v515, 0
        %v536 = vsel %vm531, %v516, 0
        %v539 = vsel %vm531, %v517, 0
        %v542 = vsel %vm531, %v518, 0
        %v545 = vsel %vm531, %v519, 0
        %547 = vmatprep.subr.mxu0 0.0
        %548 = vmatpush1.msra.mxu0 0.0
        %549 = vmatprep.subr.mxu0 0.0
        %550 = vmatpush1.msra.mxu0 0.0
        %551 = vmatprep.subr.mxu0 0.0
        %552 = vmatpush1.msra.mxu0 0.0
        %553 = vmatprep.subr.mxu0 0.0
        %554 = vmatpush1.msra.mxu0 0.0
        %555 = vmatprep.subr.mxu0 0.0
        %556 = vmatpush1.msra.mxu0 0.0
        %557 = vmatprep.subr.mxu0 0.0
        %558 = vmatpush1.msra.mxu0 0.0
        %559 = vmatprep.subr.mxu0 0.0
        %560 = vmatpush1.msra.mxu0 0.0
        %561 = vmatprep.subr.mxu0 0.0
        %562 = vmatpush1.msra.mxu0 0.0
        %563 = vmatprep.subr.mxu0 0.0
        %564 = vmatpush1.msra.mxu0 0.0
        %565 = vmatprep.subr.mxu0 0.0
        %566 = vmatpush1.msra.mxu0 0.0
        %567 = vmatprep.subr.mxu0 0.0
        %568 = vmatpush1.msra.mxu0 0.0
        %569 = vmatprep.subr.mxu0 0.0
        %570 = vmatpush1.msra.mxu0 0.0
        %571 = vmatprep.subr.mxu0 0.0
        %572 = vmatpush1.msra.mxu0 0.0
        %573 = vmatprep.subr.mxu0 0.0
        %574 = vmatpush1.msra.mxu0 0.0
        %575 = vmatprep.subr.mxu0 0.0
        %576 = vmatpush1.msra.mxu0 %v498
        %577 = vmatprep.subr.mxu0 0.0
        %578 = vmatpush1.msra.mxu0 %v497
        %579 = vmatprep.subr.mxu0 0.0
        %580 = vmatpush2.msra.mxu0 0.0
        %581 = vmatprep.subr.mxu0 0.0
        %582 = vmatpush2.msra.mxu0 0.0
        %583 = vmatprep.subr.mxu0 0.0
        %584 = vmatpush2.msra.mxu0 0.0
        %585 = vmatprep.subr.mxu0 0.0
        %586 = vmatpush2.msra.mxu0 0.0
        %587 = vmatprep.subr.mxu0 0.0
        %588 = vmatpush2.msra.mxu0 0.0
        %589 = vmatprep.subr.mxu0 0.0
        %590 = vmatpush2.msra.mxu0 0.0
        %591 = vmatprep.subr.mxu0 0.0
        %592 = vmatpush2.msra.mxu0 0.0
        %593 = vmatprep.subr.mxu0 0.0
        %594 = vmatpush2.msra.mxu0 0.0
        %595 = vmatprep.subr.mxu0 0.0
        %596 = vmatpush2.msra.mxu0 0.0
        %597 = vmatprep.subr.mxu0 0.0
        %598 = vmatpush2.msra.mxu0 0.0
        %599 = vmatprep.subr.mxu0 0.0
        %600 = vmatpush2.msra.mxu0 0.0
        %601 = vmatprep.subr.mxu0 0.0
        %602 = vmatpush2.msra.mxu0 0.0
        %603 = vmatprep.subr.mxu0 0.0
        %604 = vmatpush2.msra.mxu0 0.0
        %605 = vmatprep.subr.mxu0 0.0
        %606 = vmatpush2.msra.mxu0 0.0
        %607 = vmatprep.subr.mxu0 0.0
        %608 = vmatpush2.msra.mxu0 0.0
        %609 = vmatprep.subr.mxu0 0.0
        %610 = vmatpush2.msra.mxu0 0.0
        %611 = vmatprep.mubr.f32.mxu0 0.0
        %612 = vmatmul.mubr.f32.gmra.mxu0 %v533
        %v613 = vpop.f32.mrf.mxu0
        %v614 = vadd.f32 0.0, %v613
        %v615 = vpop.f32.mrf.mxu0
        %616 = vmatprep.mubr.f32.mxu0 0.0
        %617 = vmatmul.mubr.f32.gmra.mxu0 %v536
        %v618 = vpop.f32.mrf.mxu0
        %v619 = vadd.f32 0.0, %v618
        %v620 = vpop.f32.mrf.mxu0
        %621 = vmatprep.mubr.f32.mxu0 0.0
        %622 = vmatmul.mubr.f32.gmra.mxu0 %v539
        %v623 = vpop.f32.mrf.mxu0
        %v624 = vadd.f32 0.0, %v623
        %v625 = vpop.f32.mrf.mxu0
        %626 = vmatprep.mubr.f32.mxu0 0.0
        %627 = vmatmul.mubr.f32.gmra.mxu0 %v542
        %v628 = vpop.f32.mrf.mxu0
        %v629 = vadd.f32 0.0, %v628
        %v630 = vpop.f32.mrf.mxu0
        %631 = vmatprep.mubr.f32.mxu0 0.0
        %632 = vmatmul.mubr.f32.gmra.mxu0 %v545
        %v633 = vpop.f32.mrf.mxu0
        %v634 = vadd.f32 0.0, %v633
        %v635 = vpop.f32.mrf.mxu0
        %636 = vdwg.mxu0
        %vm637 = vcmask 16384
        %638 = vst.msk [vmem:[#allocation2] sm:$0x1] %vm637, %v481
        %v639 = vld [vmem:[#allocation3] sm:$0xff]
        %v640 = vld [vmem:[#allocation3 + $0x8] sm:$0xff]
        %v641 = vld [vmem:[#allocation3 + $0x10] sm:$0xff]
        %v642 = vld [vmem:[#allocation3 + $0x18] sm:$0xff]
        %v643 = vld [vmem:[#allocation3 + $0x20] sm:$0x1]
        %v645 = vlaneseq
        %v646 = vshrl.u32 %v645, 7
        %v647 = vsub.s32 0, %v646
        %v648 = vrot.slane %v484, %v647
        %v650 = vmul.f32 %v639, %v648
        %v651 = vmul.f32 %v640, %v648
        %v652 = vmul.f32 %v641, %v648
        %v653 = vmul.f32 %v642, %v648
        %v654 = vmul.f32 %v643, %v648
        %v655 = vadd.f32 %v650, %v614
        %v656 = vadd.f32 %v651, %v619
        %v657 = vadd.f32 %v652, %v624
        %v658 = vadd.f32 %v653, %v629
        %v659 = vadd.f32 %v654, %v634
        %660 = vst.msk [vmem:[#allocation3] sm:$0xff] %vm471, %v655
        %661 = vst.msk [vmem:[#allocation3 + $0x8] sm:$0xff] %vm471, %v656
        %662 = vst.msk [vmem:[#allocation3 + $0x10] sm:$0xff] %vm471, %v657
        %663 = vst.msk [vmem:[#allocation3 + $0x18] sm:$0xff] %vm471, %v658
        %664 = vst.msk [vmem:[#allocation3 + $0x20] sm:$0x1] %vm637, %v659
        %p665 = scmp.eq.s32.totalorder %s20, 2
        // Predicated region
        $region57: #{tpu_custom_call.1} parent=51 // pred_check
          %p666 = pneg %p665
        $region58: #{tpu_custom_call.1} parent=51 // pred_check_branch
          %668 = sbr.rel (%p666) target = $region60
        $region59: #{tpu_custom_call.1} parent=51 // pred_region
          %v669 = vld [vmem:[#allocation3] sm:$0xff]
          %v670 = vld [vmem:[#allocation3 + $0x8] sm:$0xff]
          %v671 = vld [vmem:[#allocation3 + $0x10] sm:$0xff]
          %v672 = vld [vmem:[#allocation3 + $0x18] sm:$0xff]
          %v673 = vld [vmem:[#allocation3 + $0x20] sm:$0x1]
          %v674 = vlaneseq
          %v675 = vshrl.u32 %v674, 7
          %v676 = vsub.s32 0, %v675
          %v677 = vrot.slane %v673, %v676
          %v678 = vrcp.pop %v677
          %v679 = vmul.f32 %v669, %v678
          %v680 = vmul.f32 %v670, %v678
          %v681 = vmul.f32 %v671, %v678
          %v682 = vmul.f32 %v672, %v678
          %v683 = vld [vmem:[%s2] sm:$0x7]
          %v684 = vld [vmem:[%s5] sm:$0xff]
          %v685 = vld [vmem:[%s5 + $0x8] sm:$0xff]
          %v686 = vld [vmem:[%s5 + $0x10] sm:$0xff]
          %v687 = vld [vmem:[%s5 + $0x18] sm:$0xff]
          %v688 = vld [vmem:[%s6] sm:$0xff]
          %v689 = vld [vmem:[%s6 + $0x8] sm:$0xff]
          %v690 = vld [vmem:[%s6 + $0x10] sm:$0xff]
          %v691 = vld [vmem:[%s6 + $0x18] sm:$0xff]
          %v693 = vsel %vm341, %v683, 0
          %695 = vmatprep.subr.mxu0 0.0
          %696 = vmatpush1.msra.mxu0 0.0
          %697 = vmatprep.subr.mxu0 0.0
          %698 = vmatpush1.msra.mxu0 0.0
          %699 = vmatprep.subr.mxu0 0.0
          %700 = vmatpush1.msra.mxu0 0.0
          %701 = vmatprep.subr.mxu0 0.0
          %702 = vmatpush1.msra.mxu0 0.0
          %703 = vmatprep.subr.mxu0 0.0
          %704 = vmatpush1.msra.mxu0 0.0
          %705 = vmatprep.subr.mxu0 0.0
          %706 = vmatpush1.msra.mxu0 0.0
          %707 = vmatprep.subr.mxu0 0.0
          %708 = vmatpush1.msra.mxu0 0.0
          %709 = vmatprep.subr.mxu0 0.0
          %710 = vmatpush1.msra.mxu0 0.0
          %711 = vmatprep.subr.mxu0 0.0
          %712 = vmatpush1.msra.mxu0 0.0
          %713 = vmatprep.subr.mxu0 0.0
          %714 = vmatpush1.msra.mxu0 0.0
          %715 = vmatprep.subr.mxu0 0.0
          %716 = vmatpush1.msra.mxu0 0.0
          %717 = vmatprep.subr.mxu0 0.0
          %718 = vmatpush1.msra.mxu0 0.0
          %719 = vmatprep.subr.mxu0 0.0
          %720 = vmatpush1.msra.mxu0 %v691
          %721 = vmatprep.subr.mxu0 0.0
          %722 = vmatpush1.msra.mxu0 %v690
          %723 = vmatprep.subr.mxu0 0.0
          %724 = vmatpush1.msra.mxu0 %v689
          %725 = vmatprep.subr.mxu0 0.0
          %726 = vmatpush1.msra.mxu0 %v688
          %727 = vmatprep.subr.mxu0 0.0
          %728 = vmatpush2.msra.mxu0 0.0
          %729 = vmatprep.subr.mxu0 0.0
          %730 = vmatpush2.msra.mxu0 0.0
          %731 = vmatprep.subr.mxu0 0.0
          %732 = vmatpush2.msra.mxu0 0.0
          %733 = vmatprep.subr.mxu0 0.0
          %734 = vmatpush2.msra.mxu0 0.0
          %735 = vmatprep.subr.mxu0 0.0
          %736 = vmatpush2.msra.mxu0 0.0
          %737 = vmatprep.subr.mxu0 0.0
          %738 = vmatpush2.msra.mxu0 0.0
          %739 = vmatprep.subr.mxu0 0.0
          %740 = vmatpush2.msra.mxu0 0.0
          %741 = vmatprep.subr.mxu0 0.0
          %742 = vmatpush2.msra.mxu0 0.0
          %743 = vmatprep.subr.mxu0 0.0
          %744 = vmatpush2.msra.mxu0 0.0
          %745 = vmatprep.subr.mxu0 0.0
          %746 = vmatpush2.msra.mxu0 0.0
          %747 = vmatprep.subr.mxu0 0.0
          %748 = vmatpush2.msra.mxu0 0.0
          %749 = vmatprep.subr.mxu0 0.0
          %750 = vmatpush2.msra.mxu0 0.0
          %751 = vmatprep.subr.mxu0 0.0
          %752 = vmatpush2.msra.mxu0 0.0
          %753 = vmatprep.subr.mxu0 0.0
          %754 = vmatpush2.msra.mxu0 0.0
          %755 = vmatprep.subr.mxu0 0.0
          %756 = vmatpush2.msra.mxu0 0.0
          %757 = vmatprep.subr.mxu0 0.0
          %758 = vmatpush2.msra.mxu0 0.0
          %759 = vmatprep.mubr.f32.mxu0 0.0
          %760 = vmatmul.mubr.f32.gmra.mxu0 %v693
          %v761 = vpop.f32.mrf.mxu0
          %v762 = vadd.f32 0.0, %v761
          %v763 = vpop.f32.mrf.mxu0
          %764 = vdwg.mxu0
          %765 = vxpose.xlu0.b32.start [1/16] %v679, 128
          %766 = vxpose.xlu0.b32.cont [2/16] %v680, 128
          %767 = vxpose.xlu0.b32.cont [3/16] %v681, 128
          %768 = vxpose.xlu0.b32.cont [4/16] %v682, 128
          %769 = vxpose.xlu0.b32.cont [5/16] 0.0, 128
          %770 = vxpose.xlu0.b32.cont [6/16] 0.0, 128
          %771 = vxpose.xlu0.b32.cont [7/16] 0.0, 128
          %772 = vxpose.xlu0.b32.cont [8/16] 0.0, 128
          %773 = vxpose.xlu0.b32.cont [9/16] 0.0, 128
          %774 = vxpose.xlu0.b32.cont [10/16] 0.0, 128
          %775 = vxpose.xlu0.b32.cont [11/16] 0.0, 128
          %776 = vxpose.xlu0.b32.cont [12/16] 0.0, 128
          %777 = vxpose.xlu0.b32.cont [13/16] 0.0, 128
          %778 = vxpose.xlu0.b32.cont [14/16] 0.0, 128
          %779 = vxpose.xlu0.b32.cont [15/16] 0.0, 128
          %780 = vxpose.xlu0.b32.end [16/16] 0.0, 128
          %v781 = vpop.trf.xlu0
          %v782 = vpop.trf.xlu0
          %v783 = vpop.trf.xlu0
          %v784 = vpop.trf.xlu0
          %v785 = vpop.trf.xlu0
          %v786 = vpop.trf.xlu0
          %v787 = vpop.trf.xlu0
          %v788 = vpop.trf.xlu0
          %v789 = vpop.trf.xlu0
          %v790 = vpop.trf.xlu0
          %v791 = vpop.trf.xlu0
          %v792 = vpop.trf.xlu0
          %v793 = vpop.trf.xlu0
          %v794 = vpop.trf.xlu0
          %v795 = vpop.trf.xlu0
          %v796 = vpop.trf.xlu0
          %v798 = vsel %vm341, %v781, 0
          %800 = vmatprep.subr.mxu0 0.0
          %801 = vmatpush1.msra.mxu0 0.0
          %802 = vmatprep.subr.mxu0 0.0
          %803 = vmatpush1.msra.mxu0 0.0
          %804 = vmatprep.subr.mxu0 0.0
          %805 = vmatpush1.msra.mxu0 0.0
          %806 = vmatprep.subr.mxu0 0.0
          %807 = vmatpush1.msra.mxu0 0.0
          %808 = vmatprep.subr.mxu0 0.0
          %809 = vmatpush1.msra.mxu0 0.0
          %810 = vmatprep.subr.mxu0 0.0
          %811 = vmatpush1.msra.mxu0 0.0
          %812 = vmatprep.subr.mxu0 0.0
          %813 = vmatpush1.msra.mxu0 0.0
          %814 = vmatprep.subr.mxu0 0.0
          %815 = vmatpush1.msra.mxu0 0.0
          %816 = vmatprep.subr.mxu0 0.0
          %817 = vmatpush1.msra.mxu0 0.0
          %818 = vmatprep.subr.mxu0 0.0
          %819 = vmatpush1.msra.mxu0 0.0
          %820 = vmatprep.subr.mxu0 0.0
          %821 = vmatpush1.msra.mxu0 0.0
          %822 = vmatprep.subr.mxu0 0.0
          %823 = vmatpush1.msra.mxu0 0.0
          %824 = vmatprep.subr.mxu0 0.0
          %825 = vmatpush1.msra.mxu0 %v687
          %826 = vmatprep.subr.mxu0 0.0
          %827 = vmatpush1.msra.mxu0 %v686
          %828 = vmatprep.subr.mxu0 0.0
          %829 = vmatpush1.msra.mxu0 %v685
          %830 = vmatprep.subr.mxu0 0.0
          %831 = vmatpush1.msra.mxu0 %v684
          %832 = vmatprep.subr.mxu0 0.0
          %833 = vmatpush2.msra.mxu0 0.0
          %834 = vmatprep.subr.mxu0 0.0
          %835 = vmatpush2.msra.mxu0 0.0
          %836 = vmatprep.subr.mxu0 0.0
          %837 = vmatpush2.msra.mxu0 0.0
          %838 = vmatprep.subr.mxu0 0.0
          %839 = vmatpush2.msra.mxu0 0.0
          %840 = vmatprep.subr.mxu0 0.0
          %841 = vmatpush2.msra.mxu0 0.0
          %842 = vmatprep.subr.mxu0 0.0
          %843 = vmatpush2.msra.mxu0 0.0
          %844 = vmatprep.subr.mxu0 0.0
          %845 = vmatpush2.msra.mxu0 0.0
          %846 = vmatprep.subr.mxu0 0.0
          %847 = vmatpush2.msra.mxu0 0.0
          %848 = vmatprep.subr.mxu0 0.0
          %849 = vmatpush2.msra.mxu0 0.0
          %850 = vmatprep.subr.mxu0 0.0
          %851 = vmatpush2.msra.mxu0 0.0
          %852 = vmatprep.subr.mxu0 0.0
          %853 = vmatpush2.msra.mxu0 0.0
          %854 = vmatprep.subr.mxu0 0.0
          %855 = vmatpush2.msra.mxu0 0.0
          %856 = vmatprep.subr.mxu0 0.0
          %857 = vmatpush2.msra.mxu0 0.0
          %858 = vmatprep.subr.mxu0 0.0
          %859 = vmatpush2.msra.mxu0 0.0
          %860 = vmatprep.subr.mxu0 0.0
          %861 = vmatpush2.msra.mxu0 0.0
          %862 = vmatprep.subr.mxu0 0.0
          %863 = vmatpush2.msra.mxu0 0.0
          %864 = vmatprep.mubr.f32.mxu0 0.0
          %865 = vmatmul.mubr.f32.gmra.mxu0 %v798
          %v866 = vpop.f32.mrf.mxu0
          %v867 = vadd.f32 %v762, %v866
          %v868 = vpop.f32.mrf.mxu0
          %869 = vdwg.mxu0
          %v870 = vld [vmem:[%s7] sm:$0x1]
          %v872 = vlaneseq
          %v873 = vshrl.u32 %v872, 7
          %v874 = vsub.s32 0, %v873
          %v875 = vrot.slane %v870, %v874
          %v877 = vadd.f32 %v867, %v875
          %vm878 = vcmp.gt.f32.partialorder %v877, 0.0
          %v879 = vmul.f32 %v877, 0.01
          %v880 = vsel %vm878, %v877, %v879
          %v881 = vadd.f32 %v880, %v683
          %vm882 = vcmask 256000
          %883 = vst.msk [vmem:[#allocation4] sm:$0x7] %vm882, %v881
        $region60: #{tpu_custom_call.1} parent=51 // pred_fallthru
          _
        // Predicated region
        $region61: #{tpu_custom_call.1} parent=51 // pred_check
          %p884 = pneg %p211
        $region62: #{tpu_custom_call.1} parent=51 // pred_check_branch
          %886 = sbr.rel (%p884) target = $region64
        $region63: #{tpu_custom_call.1} parent=51 // pred_region
          %s888 = ssub.s32 64, 64
          %889 = vsyncadd [#allocation5], %s888
          %s891 = sshll.u32 [#allocation4], 4
          %s892 = int_to_ptr.vmem [resolvable:$true] %s891
          %894 = dma.vmem_to_hbm [thread:$0]  %s892, 64, %s8, [#allocation5]
        $region64: #{tpu_custom_call.1} parent=51 // pred_fallthru
          _
        // Predicated region
        $region65: #{tpu_custom_call.1} parent=51 // pred_check
          %p895 = pneg %p211
        $region66: #{tpu_custom_call.1} parent=51 // pred_check_branch
          %897 = sbr.rel (%p895) target = $region68
        $region67: #{tpu_custom_call.1} parent=51 // pred_region
          %898 = dma.done [#allocation5], 64
        $region68: #{tpu_custom_call.1} parent=51 // pred_fallthru
          _
      $region52: #{tpu_custom_call.1} parent=5 // pred_fallthru
        _
      %p899 = scmp.le.s32.totalorder 2, %s15
      // Predicated region
      $region69: #{tpu_custom_call.1} parent=5 // pred_check
        %p900 = pneg %p899
      $region70: #{tpu_custom_call.1} parent=5 // pred_check_branch
        %902 = sbr.rel (%p900) target = $region72
      $region71: #{tpu_custom_call.1} parent=5 // pred_region
        %s903 = ssub.s32 %s15, 2
      $region72: #{tpu_custom_call.1} parent=5 // pred_fallthru
        _
    $region6: #{tpu_custom_call.1} parent=1 // loop_footer
      %s19 = sadd.s32 1, %s15
    $region7: #{tpu_custom_call.1} parent=1 // loop_footer_branch
      %14 = sbr.rel target = $region3
    $region8: #{tpu_custom_call.1} parent=1 // loop_exit
      _
    %904 = vsyncpa [#allocation5], 1
    %s905 = scalar_lea.sflag [#allocation5], 1
    %906 = vsyncpa %s905, 1

</llo_original>
